<compile_context>
chip_gen: v7x
topology: tpu7x:2x2x1
jax: 0.10.0
libtpu: 0.0.40
codegen_flags: <defaults>
</compile_context>

<pallas_src>
import functools

import jax
import jax.numpy as jnp
from jax.experimental import pallas as pl
from jax.experimental.pallas import tpu as pltpu


def _round_up(x, m):
    return ((x + m - 1) // m) * m


def _margin_loss_kernel(lengths_ref, targets_ref, out_ref, *,
                        m_pos, m_neg, lambda_, n_valid_rows, scale, block_rows):
    i = pl.program_id(0)

    # Init the resident (1,1) accumulator on the first grid step.
    @pl.when(i == 0)
    def _init():
        out_ref[...] = jnp.zeros_like(out_ref)

    lengths = lengths_ref[...]                       # (TB, C) f32
    targets = targets_ref[...]                       # (TB, 1) i32

    # One-hot via iota == target (replaces torch scatter_).
    class_ids = jax.lax.broadcasted_iota(jnp.int32, lengths.shape, 1)
    t = (class_ids == targets).astype(jnp.float32)   # (TB, C)

    pos = jnp.maximum(m_pos - lengths, 0.0)
    neg = jnp.maximum(lengths - m_neg, 0.0)
    losses = t * (pos * pos) + lambda_ * ((1.0 - t) * (neg * neg))

    # Mask rows that only exist because B was padded up to a multiple of the tile.
    row_ids = i * block_rows + jax.lax.broadcasted_iota(jnp.int32, lengths.shape, 0)
    losses = jnp.where(row_ids < n_valid_rows, losses, 0.0)

    out_ref[...] += jnp.sum(losses, axis=(0, 1), keepdims=True)

    # Finalize: mean (or sum) scaling on the last grid step.
    @pl.when(i == pl.num_programs(0) - 1)
    def _finalize():
        out_ref[...] = out_ref[...] * scale


def margin_loss(lengths, targets, m_pos, m_neg, lambda_,
                size_average=True, block_rows=2048):
    """lengths: (B, C) float, targets: (B,) int class ids. Returns scalar loss."""
    B, C = lengths.shape
    lengths = lengths.astype(jnp.float32)
    targets = targets.astype(jnp.int32).reshape(B, 1)

    tb = min(int(block_rows), _round_up(B, 8))        # rows per grid step (multiple of 8)
    b_pad = _round_up(B, tb)
    if b_pad != B:
        lengths = jnp.pad(lengths, ((0, b_pad - B), (0, 0)))
        targets = jnp.pad(targets, ((0, b_pad - B), (0, 0)))

    scale = (1.0 / (B * C)) if size_average else 1.0
    kernel = functools.partial(
        _margin_loss_kernel,
        m_pos=float(m_pos), m_neg=float(m_neg), lambda_=float(lambda_),
        n_valid_rows=B, scale=float(scale), block_rows=tb)

    out = pl.pallas_call(
        kernel,
        out_shape=jax.ShapeDtypeStruct((1, 1), jnp.float32),
        grid=(b_pad // tb,),
        in_specs=[
            pl.BlockSpec((tb, C), lambda i: (i, 0)),   # lengths tile
            pl.BlockSpec((tb, 1), lambda i: (i, 0)),   # targets tile
        ],
        # Resident scalar accumulator: same output block for every grid step.
        out_specs=pl.BlockSpec((1, 1), lambda i: (0, 0)),
        compiler_params=pltpu.CompilerParams(
            # The batch axis carries the running sum -> reduction ("arbitrary") axis.
            dimension_semantics=("arbitrary",)),
    )(lengths, targets)
    return out[0, 0]


def _margin_loss_ref(lengths, targets, m_pos, m_neg, lambda_, size_average=True):
    t = jax.nn.one_hot(targets, lengths.shape[1], dtype=jnp.float32)
    losses = (t * jnp.maximum(m_pos - lengths, 0.0) ** 2
              + lambda_ * (1.0 - t) * jnp.maximum(lengths - m_neg, 0.0) ** 2)
    return losses.mean() if size_average else losses.sum()


if __name__ == "__main__":
    key = jax.random.PRNGKey(0)
    k_len, k_tgt = jax.random.split(key)

    B, C = 16, 10                       # batch a multiple of 8 (f32 sublane tile), 10 classes
    m_pos, m_neg, lambda_ = 0.9, 0.1, 0.5

    lengths = jax.random.uniform(k_len, (B, C), jnp.float32)    # capsule lengths in [0, 1)
    targets = jax.random.randint(k_tgt, (B,), 0, C, jnp.int32)

    loss_fn = jax.jit(functools.partial(margin_loss, m_pos=m_pos, m_neg=m_neg,
                                        lambda_=lambda_, size_average=True))
    loss = jax.block_until_ready(loss_fn(lengths, targets))

    ref = _margin_loss_ref(lengths, targets, m_pos, m_neg, lambda_, True)
    assert loss.shape == (), loss.shape
    assert bool(jnp.isfinite(loss))
    assert bool(jnp.allclose(loss, ref, rtol=1e-5, atol=1e-6)), (loss, ref)
    print("KERNEL_OK")
</pallas_src>

<mosaic_0001>
module attributes {stable_mosaic.version = 11 : i64} {
  func.func @_margin_loss_kernel(%arg0: i32, %arg1: memref<16x10xf32, #tpu.memory_space<vmem>>, %arg2: memref<16x1xi32, #tpu.memory_space<vmem>>, %arg3: memref<1x1xf32, #tpu.memory_space<vmem>>) attributes {dimension_semantics = [#tpu.dimension_semantics<arbitrary>], iteration_bounds = array<i64: 1>, scalar_prefetch = 0 : i64, scratch_operands = 0 : i64, tpu.core_type = #tpu.core_type<tc>, window_params = [{transform_indices = @transform_0, window_bounds = array<i64: 16, 10>}, {transform_indices = @transform_1, window_bounds = array<i64: 16, 1>}, {pipeline_mode = #tpu.pipeline_mode<synchronous>, transform_indices = @transform_2, window_bounds = array<i64: 1, 1>}]} {
    %c0_i32 = arith.constant 0 : i32
    %0 = arith.cmpi eq, %arg0, %c0_i32 : i32
    %1 = arith.extui %0 : i1 to i32
    %c0_i32_0 = arith.constant 0 : i32
    %2 = arith.cmpi ne, %1, %c0_i32_0 : i32
    scf.if %2 {
      %cst_18 = arith.constant 0.000000e+00 : f32
      %46 = vector.broadcast %cst_18 : f32 to vector<1x1xf32>
      %c0_19 = arith.constant 0 : index
      %c0_20 = arith.constant 0 : index
      %47 = vector.load %arg3[%c0_19, %c0_20] : memref<1x1xf32, #tpu.memory_space<vmem>>, vector<1x1xf32>
      tpu.vector_store %arg3[%c0_19, %c0_20], %46 {strides = array<i32>} : memref<1x1xf32, #tpu.memory_space<vmem>>, vector<1x1xf32>,
    } else {
    }
    %c0 = arith.constant 0 : index
    %c0_1 = arith.constant 0 : index
    %3 = vector.load %arg1[%c0, %c0_1] : memref<16x10xf32, #tpu.memory_space<vmem>>, vector<16x10xf32>
    %c0_2 = arith.constant 0 : index
    %c0_3 = arith.constant 0 : index
    %4 = vector.load %arg2[%c0_2, %c0_3] : memref<16x1xi32, #tpu.memory_space<vmem>>, vector<16x1xi32>
    %5 = tpu.iota {dimensions = array<i32: 1>} : vector<16x10xi32>
    %6 = vector.broadcast %4 : vector<16x1xi32> to vector<16x10xi32>
    %7 = arith.cmpi eq, %5, %6 : vector<16x10xi32>
    %8 = arith.extui %7 : vector<16x10xi1> to vector<16x10xi32>
    %9 = arith.sitofp %8 : vector<16x10xi32> to vector<16x10xf32>
    %cst = arith.constant 0.899999976 : f32
    %10 = vector.broadcast %cst : f32 to vector<16x10xf32>
    %11 = arith.subf %10, %3 : vector<16x10xf32>
    %cst_4 = arith.constant 0.000000e+00 : f32
    %12 = vector.broadcast %cst_4 : f32 to vector<16x10xf32>
    %13 = arith.maximumf %11, %12 : vector<16x10xf32>
    %cst_5 = arith.constant 1.000000e-01 : f32
    %14 = vector.broadcast %cst_5 : f32 to vector<16x10xf32>
    %15 = arith.subf %3, %14 : vector<16x10xf32>
    %cst_6 = arith.constant 0.000000e+00 : f32
    %16 = vector.broadcast %cst_6 : f32 to vector<16x10xf32>
    %17 = arith.maximumf %15, %16 : vector<16x10xf32>
    %18 = arith.mulf %13, %13 : vector<16x10xf32>
    %19 = arith.mulf %9, %18 : vector<16x10xf32>
    %cst_7 = arith.constant 1.000000e+00 : f32
    %20 = vector.broadcast %cst_7 : f32 to vector<16x10xf32>
    %21 = arith.subf %20, %9 : vector<16x10xf32>
    %22 = arith.mulf %17, %17 : vector<16x10xf32>
    %23 = arith.mulf %21, %22 : vector<16x10xf32>
    %cst_8 = arith.constant 5.000000e-01 : f32
    %24 = vector.broadcast %cst_8 : f32 to vector<16x10xf32>
    %25 = arith.mulf %24, %23 : vector<16x10xf32>
    %26 = arith.addf %19, %25 : vector<16x10xf32>
    %c16_i32 = arith.constant 16 : i32
    %27 = arith.muli %arg0, %c16_i32 : i32
    %28 = tpu.iota {dimensions = array<i32: 0>} : vector<16x10xi32>
    %29 = vector.broadcast %27 : i32 to vector<16x10xi32>
    %30 = arith.addi %29, %28 : vector<16x10xi32>
    %c16_i32_9 = arith.constant 16 : i32
    %31 = vector.broadcast %c16_i32_9 : i32 to vector<16x10xi32>
    %32 = arith.cmpi slt, %30, %31 : vector<16x10xi32>
    %cst_10 = arith.constant 0.000000e+00 : f32
    %33 = vector.broadcast %cst_10 : f32 to vector<16x10xf32>
    %34 = arith.select %32, %26, %33 : vector<16x10xi1>, vector<16x10xf32>
    %c0_11 = arith.constant 0 : index
    %c0_12 = arith.constant 0 : index
    %35 = vector.load %arg3[%c0_11, %c0_12] : memref<1x1xf32, #tpu.memory_space<vmem>>, vector<1x1xf32>
    %36 = vector.shape_cast %34 : vector<16x10xf32> to vector<1x16x10xf32>
    %cst_13 = arith.constant dense<0.000000e+00> : vector<1xf32>
    %37 = vector.multi_reduction <add>, %36, %cst_13 [1, 2] : vector<1x16x10xf32> to vector<1xf32>
    %38 = vector.shape_cast %37 : vector<1xf32> to vector<1x1x1xf32>
    %39 = vector.extract %38[0, 0, 0] : f32 from vector<1x1x1xf32>
    %40 = vector.broadcast %39 : f32 to vector<1x1xf32>
    %41 = arith.addf %35, %40 : vector<1x1xf32>
    %c0_14 = arith.constant 0 : index
    %c0_15 = arith.constant 0 : index
    %42 = vector.load %arg3[%c0_14, %c0_15] : memref<1x1xf32, #tpu.memory_space<vmem>>, vector<1x1xf32>
    tpu.vector_store %arg3[%c0_14, %c0_15], %41 {strides = array<i32>} : memref<1x1xf32, #tpu.memory_space<vmem>>, vector<1x1xf32>,
    %c0_i32_16 = arith.constant 0 : i32
    %43 = arith.cmpi eq, %arg0, %c0_i32_16 : i32
    %44 = arith.extui %43 : i1 to i32
    %c0_i32_17 = arith.constant 0 : i32
    %45 = arith.cmpi ne, %44, %c0_i32_17 : i32
    scf.if %45 {
      %c0_18 = arith.constant 0 : index
      %c0_19 = arith.constant 0 : index
      %46 = vector.load %arg3[%c0_18, %c0_19] : memref<1x1xf32, #tpu.memory_space<vmem>>, vector<1x1xf32>
      %cst_20 = arith.constant 6.250000e-03 : f32
      %47 = vector.broadcast %cst_20 : f32 to vector<1x1xf32>
      %48 = arith.mulf %46, %47 : vector<1x1xf32>
      %c0_21 = arith.constant 0 : index
      %c0_22 = arith.constant 0 : index
      %49 = vector.load %arg3[%c0_21, %c0_22] : memref<1x1xf32, #tpu.memory_space<vmem>>, vector<1x1xf32>
      tpu.vector_store %arg3[%c0_21, %c0_22], %48 {strides = array<i32>} : memref<1x1xf32, #tpu.memory_space<vmem>>, vector<1x1xf32>,
    } else {
    }
    return
  }
  func.func @transform_0(%arg0: i32) -> (i32, i32) {
    %c0_i32 = arith.constant 0 : i32
    %c0_i32_0 = arith.constant 0 : i32
    return %arg0, %c0_i32 : i32, i32
  }
  func.func @transform_1(%arg0: i32) -> (i32, i32) {
    %c0_i32 = arith.constant 0 : i32
    %c0_i32_0 = arith.constant 0 : i32
    return %arg0, %c0_i32 : i32, i32
  }
  func.func @transform_2(%arg0: i32) -> (i32, i32) {
    %c0_i32 = arith.constant 0 : i32
    %c0_i32_0 = arith.constant 0 : i32
    %c0_i32_1 = arith.constant 0 : i32
    return %c0_i32, %c0_i32_0 : i32, i32
  }
}

</mosaic_0001>

<llo_original>
// kernel: margin_loss.1
$region0: #{margin_loss.1}
  #allocation0 [shape = 'u32[]', space=smem, size = 0x4, offset = 0x4, fixed_abs, tag = 'smem constant byte address 0x4 - core index']
  #allocation1 [shape = 'u32[144,128]{1,0:T(1,128)}', space=vmem, size = 0x12000, scoped, tag = 'internal scratch']
  %s0 = inlined_call_operand.vmem [shape: f32[16,10], index: 0, kind: input, shape index: {}]
  %s1 = inlined_call_operand.vmem [shape: s32[16,1], index: 1, kind: input, shape index: {}]
  %s2 = inlined_call_operand.hbm [shape: f32[1,1], index: 2, kind: output, shape index: {}]
  %s3 = sld [smem:[#allocation0]]
  $region26: #{margin_loss.1} parent=0
    _
  %s5 = ssub.s32 1, %s3
  %s6 = scalar_select 0, %s5, %s3
  $region1: #{margin_loss.1} parent=0
    #allocation2 [shape = 'u8[512]{0}', space=vmem, size = 0x400, scoped, tag = 'output window, operand 0, single buffered']
    #allocation3 [shape = 's32[1]{0}', space=sflag, size = 0x4, scoped, tag = 'scoped memory for margin_loss.1']
    %7 = vsyncpa [#allocation3], 0
    // Predicated region
    $region2: #{margin_loss.1} parent=1 // pred_check
      _
    $region3: #{margin_loss.1} parent=1 // pred_check_branch
      %9 = sbr.rel (0) target = $region5
    $region4: #{margin_loss.1} parent=1 // pred_region
      _
    $region5: #{margin_loss.1} parent=1 // pred_fallthru
      _
    // Predicated region
    $region6: #{margin_loss.1} parent=1 // pred_check
      _
    $region7: #{margin_loss.1} parent=1 // pred_check_branch
      %11 = sbr.rel (0) target = $region9
    $region8: #{margin_loss.1} parent=1 // pred_region
      _
    $region9: #{margin_loss.1} parent=1 // pred_fallthru
      _
    %p12 = scmp.eq.s32.totalorder 0, 0
    // Predicated region
    $region10: #{margin_loss.1} parent=1 // pred_check
      %p13 = pneg %p12
    $region11: #{margin_loss.1} parent=1 // pred_check_branch
      %15 = sbr.rel (%p13) target = $region13
    $region12: #{margin_loss.1} parent=1 // pred_region
      %vm16 = vcmask 0
      %17 = vst.msk [vmem:[#allocation2] sm:$0x1] %vm16, 0.0
    $region13: #{margin_loss.1} parent=1 // pred_fallthru
      _
    %v18 = vld [vmem:[%s0] sm:$0xff]
    %v19 = vld [vmem:[%s0 + $0x8] sm:$0xff]
    %v20 = vld [vmem:[%s1] sm:$0xff]
    %v21 = vld [vmem:[%s1 + $0x8] sm:$0xff]
    %v22 = vlaneseq
    %v23 = vand.u32 %v22, 127
    %24 = vset.pattern.permute.xlu0 0
    %25 = vperm.xlu0 %24, %v20
    %v26 = vpop.permute.xlu0 %25
    %27 = vset.pattern.permute.xlu0 0
    %28 = vperm.xlu0 %27, %v21
    %v29 = vpop.permute.xlu0 %28
    %vm30 = vcmp.eq.s32.totalorder %v23, %v26
    %vm31 = vcmp.eq.s32.totalorder %v23, %v29
    %v32 = vsel %vm30, 1, 0
    %v33 = vsel %vm31, 1, 0
    %v34 = vcvt.s32.f32 %v32
    %v35 = vcvt.s32.f32 %v33
    %v36 = vsub.f32 0.9, %v18
    %v37 = vsub.f32 0.9, %v19
    %v38 = vmax.f32 %v36, 0.0
    %v39 = vmax.f32 %v37, 0.0
    %v40 = vsub.f32 %v18, 0.1
    %v41 = vsub.f32 %v19, 0.1
    %v42 = vmax.f32 %v40, 0.0
    %v43 = vmax.f32 %v41, 0.0
    %v44 = vmul.f32 %v38, %v38
    %v45 = vmul.f32 %v39, %v39
    %v46 = vmul.f32 %v34, %v44
    %v47 = vmul.f32 %v35, %v45
    %v48 = vsub.f32 1.0, %v34
    %v49 = vsub.f32 1.0, %v35
    %v50 = vmul.f32 %v42, %v42
    %v51 = vmul.f32 %v43, %v43
    %v52 = vmul.f32 %v48, %v50
    %v53 = vmul.f32 %v49, %v51
    %v54 = vmul.f32 %v52, 0.5
    %v55 = vmul.f32 %v53, 0.5
    %v56 = vadd.f32 %v46, %v54
    %v57 = vadd.f32 %v47, %v55
    %s58 = smul.u32 0, 16
    %v59 = vlaneseq
    %v60 = vshrl.u32 %v59, 7
    %v61 = vadd.s32 %v60, 8
    %v62 = vstv %s58
    %v63 = vadd.s32 %v62, %v60
    %v64 = vadd.s32 %v62, %v61
    %vm65 = vcmp.lt.s32.totalorder %v63, 16
    %vm66 = vcmp.lt.s32.totalorder %v64, 16
    %v67 = vsel %vm65, %v56, 0.0
    %v68 = vsel %vm66, %v57, 0.0
    %v69 = vld [vmem:[#allocation2] sm:$0x1]
    %vm70 = vcmask 80896
    %v71 = vsel %vm70, %v67, 0.0
    %v72 = vsel %vm70, %v68, 0.0
    %v73 = vadd.f32 %v71, %v72
    %74 = vadd.xlane.f32.xlu0 %v73
    %v75 = vpop.xlane.xlu0 %74
    %v76 = vrot.slane %v75, 4
    %v77 = vadd.f32 %v75, %v76
    %v78 = vrot.slane %v77, 2
    %v79 = vadd.f32 %v77, %v78
    %v80 = vrot.slane %v79, 1
    %v81 = vadd.f32 %v79, %v80
    %s82 = vtos %v81
    %v83 = vstv %s82
    %v84 = vadd.f32 %v69, %v83
    %vm85 = vcmask 0
    %86 = vst.msk [vmem:[#allocation2] sm:$0x1] %vm85, %v84
    // Predicated region
    $region14: #{margin_loss.1} parent=1 // pred_check
      %p87 = pneg %p12
    $region15: #{margin_loss.1} parent=1 // pred_check_branch
      %89 = sbr.rel (%p87) target = $region17
    $region16: #{margin_loss.1} parent=1 // pred_region
      %v90 = vld [vmem:[#allocation2] sm:$0x1]
      %v91 = vmul.f32 %v90, 0.00625
      %92 = vst.msk [vmem:[#allocation2] sm:$0x1] %vm85, %v91
    $region17: #{margin_loss.1} parent=1 // pred_fallthru
      _
    // Predicated region
    $region18: #{margin_loss.1} parent=1 // pred_check
      _
    $region19: #{margin_loss.1} parent=1 // pred_check_branch
      %94 = sbr.rel (0) target = $region21
    $region20: #{margin_loss.1} parent=1 // pred_region
      %s96 = ssub.s32 16, 16
      %97 = vsyncadd [#allocation3], %s96
      %s99 = sshll.u32 [#allocation2], 4
      %s100 = int_to_ptr.vmem [resolvable:$true] %s99
      %102 = dma.vmem_to_hbm [thread:$0]  %s100, 16, %s2, [#allocation3]
    $region21: #{margin_loss.1} parent=1 // pred_fallthru
      _
    // Predicated region
    $region22: #{margin_loss.1} parent=1 // pred_check
      _
    $region23: #{margin_loss.1} parent=1 // pred_check_branch
      %104 = sbr.rel (0) target = $region25
    $region24: #{margin_loss.1} parent=1 // pred_region
      %105 = dma.done [#allocation3], 16
    $region25: #{margin_loss.1} parent=1 // pred_fallthru
      _
    %106 = vsyncpa [#allocation3], 1

</llo_original>
